<compile_context>
chip_gen: v5e
topology: v5e:2x2
jax: 0.10.0
libtpu: 0.0.40
codegen_flags: <defaults>
</compile_context>

<pallas_src>
import functools

import jax
import jax.numpy as jnp
from jax.experimental import pallas as pl
from jax.experimental.pallas import tpu as pltpu


def _round_up(x: int, m: int) -> int:
    return ((x + m - 1) // m) * m


# --------------------------------------------------------------------------- #
# Fused MLP kernel: per layer  y = h @ W_x + one_hot @ W_cat + b ; h = tanh(y)
# --------------------------------------------------------------------------- #
def _fused_mlp_kernel(*refs, n_layers: int, has_cat: bool):
    o_ref = refs[-1]
    idx = 0
    h = refs[idx][...]                        # bf16 (tm, d_in_pad)
    idx += 1
    if has_cat:
        oh = refs[idx][...]                   # bf16 (tm, cat_dim_pad)
        idx += 1

    out = None
    for l in range(n_layers):
        w = refs[idx][...]; idx += 1          # bf16 (d_in_pad_l, d_out_pad_l), >= 0
        if has_cat:
            wc = refs[idx][...]; idx += 1     # bf16 (cat_dim_pad, d_out_pad_l), >= 0
        b = refs[idx][...]; idx += 1          # f32  (1, d_out_pad_l)
        y = jnp.dot(h, w, preferred_element_type=jnp.float32)           # MXU
        if has_cat:
            y = y + jnp.dot(oh, wc, preferred_element_type=jnp.float32)  # tiny MXU
        out = jnp.tanh(y + b)                 # f32 tanh (fast path on v5e too)
        if l + 1 < n_layers:
            h = out.astype(jnp.bfloat16)      # next MXU input
    o_ref[...] = out


def _pipeline_vmem_bytes(tm, w_x, w_c, b_rows):
    """Rough VMEM footprint of the pipelined kernel for a given batch tile."""
    d_in_pad = w_x[0].shape[0]
    d_out_last = w_x[-1].shape[1]
    est = 2 * tm * d_in_pad * 2                       # x block, double-buffered bf16
    if w_c:
        est += 2 * tm * w_c[0].shape[0] * 2           # one_hot block, double-buffered bf16
    for w in w_x:
        est += w.shape[0] * w.shape[1] * 2            # resident weight, single-buffered
    for wc in w_c:
        est += wc.shape[0] * wc.shape[1] * 2
    for br in b_rows:
        est += 8 * br.shape[1] * 4                    # (1, d) pads to 8 sublanes
    est += 2 * tm * d_out_last * 4                    # f32 output, double-buffered
    widest = max([w.shape[1] for w in w_x] + [d_in_pad])
    est += 4 * tm * widest * 4                        # live f32/bf16 intermediates
    return est


def fused_forward(x_pad, oh_pad, w_x, w_c, b_rows, *, tm):
    """One pallas_call for the whole MLP, tiled over the (sublane-padded) batch."""
    n_pad, d_in_pad = x_pad.shape
    n_layers = len(w_x)
    has_cat = oh_pad is not None
    d_out_last = w_x[-1].shape[1]

    def resident(shape):
        # Grid-invariant block: single-buffered (no dead double-buffer VMEM).
        return pl.BlockSpec(shape, lambda i: (0, 0), pipeline_mode=pl.Buffered(1))

    in_specs = [pl.BlockSpec((tm, d_in_pad), lambda i: (i, 0))]
    operands = [x_pad]
    if has_cat:
        in_specs.append(pl.BlockSpec((tm, oh_pad.shape[1]), lambda i: (i, 0)))
        operands.append(oh_pad)
    for l in range(n_layers):
        in_specs.append(resident(w_x[l].shape)); operands.append(w_x[l])
        if has_cat:
            in_specs.append(resident(w_c[l].shape)); operands.append(w_c[l])
        in_specs.append(resident(b_rows[l].shape)); operands.append(b_rows[l])

    vmem_limit = int(min(max(2 * _pipeline_vmem_bytes(tm, w_x, w_c, b_rows),
                             24 * 2**20), 46 * 2**20))

    kernel = functools.partial(_fused_mlp_kernel, n_layers=n_layers, has_cat=has_cat)
    return pl.pallas_call(
        kernel,
        out_shape=jax.ShapeDtypeStruct((n_pad, d_out_last), jnp.float32),
        grid=(pl.cdiv(n_pad, tm),),
        in_specs=in_specs,
        out_specs=pl.BlockSpec((tm, d_out_last), lambda i: (i, 0)),
        compiler_params=pltpu.CompilerParams(
            dimension_semantics=("parallel",),
            vmem_limit_bytes=vmem_limit),
    )(*operands)


@functools.partial(jax.jit, static_argnames=("n_out", "tm"))
def _forward_jit(x, one_hot_all, w_x, w_c, b_rows, *, n_out, tm):
    """Jitted full forward: padding + one_hot prep + fused kernel + final slice."""
    n, d_in = x.shape
    d_in_pad = w_x[0].shape[0]
    n_pad = _round_up(max(n, 1), 8)           # only sublane padding; ragged last block OK

    x_pad = jnp.zeros((n_pad, d_in_pad), jnp.bfloat16)
    x_pad = x_pad.at[:n, :d_in].set(x.astype(jnp.bfloat16))

    has_cat = len(w_c) > 0
    if has_cat:
        cat_dim = one_hot_all.shape[1]
        cat_dim_pad = w_c[0].shape[0]
        oh_pad = jnp.zeros((n_pad, cat_dim_pad), jnp.bfloat16)
        oh_pad = oh_pad.at[:n, :cat_dim].set(one_hot_all.astype(jnp.bfloat16))
    else:
        oh_pad = None

    out_pad = fused_forward(x_pad, oh_pad, w_x, w_c, b_rows, tm=tm)
    return out_pad[:n, :n_out]


class FCLayersMonotonicPallas:
    """JAX/Pallas port of FCLayers_Monotonic (inference; dropout == identity)."""

    def __init__(self, n_in, n_out, n_cat_list=None, n_layers=2, n_hidden=128,
                 dropout_rate=0.2, key=None):
        if key is None:
            key = jax.random.PRNGKey(0)
        if n_cat_list is not None:
            self.n_cat_list = [c if c > 1 else 0 for c in n_cat_list]
        else:
            self.n_cat_list = []
        cat_dim = sum(self.n_cat_list)
        self.cat_dim = cat_dim
        self.n_out = n_out
        self.layers_dim = [n_in] + (n_layers - 1) * [n_hidden] + [n_out]

        # Raw parameters, PyTorch nn.Linear-style uniform(-1/sqrt(fan_in), +) init.
        self.raw_params = []
        for i, (d_in, d_out) in enumerate(zip(self.layers_dim[:-1], self.layers_dim[1:])):
            fan_in = d_in + cat_dim
            kw, kb = jax.random.split(jax.random.fold_in(key, i))
            bound = 1.0 / (fan_in ** 0.5)
            W = jax.random.uniform(kw, (d_out, fan_in), jnp.float32, -bound, bound)
            b = jax.random.uniform(kb, (d_out,), jnp.float32, -bound, bound)
            self.raw_params.append((W, b))

        # One-time inference weight prep: softplus -> split x/cat part -> transpose
        # -> pad to 128-lane dims (AFTER softplus so pads are true zeros) -> bf16.
        w_x, w_c, b_rows = [], [], []
        for (W, b), d_in, d_out in zip(self.raw_params,
                                       self.layers_dim[:-1], self.layers_dim[1:]):
            Wpos = jax.nn.softplus(W)                     # (d_out, d_in + cat_dim), > 0
            d_in_pad = _round_up(d_in, 128)
            d_out_pad = _round_up(d_out, 128)
            Wx = jnp.zeros((d_in_pad, d_out_pad), jnp.float32)
            Wx = Wx.at[:d_in, :d_out].set(Wpos[:, :d_in].T)
            w_x.append(Wx.astype(jnp.bfloat16))
            if cat_dim > 0:
                cat_dim_pad = _round_up(cat_dim, 128)
                Wc = jnp.zeros((cat_dim_pad, d_out_pad), jnp.float32)
                Wc = Wc.at[:cat_dim, :d_out].set(Wpos[:, d_in:].T)
                w_c.append(Wc.astype(jnp.bfloat16))
            brow = jnp.zeros((1, d_out_pad), jnp.float32)
            brow = brow.at[0, :d_out].set(b)
            b_rows.append(brow)
        self.w_x = tuple(w_x)
        self.w_c = tuple(w_c)
        self.b_rows = tuple(b_rows)
        # TODO(synk): training-mode dropout (p=0.2) would need pltpu.prng_random_bits.

    def _choose_tm(self, n):
        n8 = _round_up(max(n, 1), 8)
        tm = min(n8, 1024)
        # v7x has 2 TensorCores: keep >= 2 "parallel" grid steps when the batch allows.
        if n8 >= 16 and pl.cdiv(n8, tm) < 2:
            tm = _round_up((n8 + 1) // 2, 8)
        # Shrink until the pipelined buffers fit a conservative VMEM budget.
        while tm > 8 and _pipeline_vmem_bytes(tm, self.w_x, self.w_c,
                                              self.b_rows) > 20 * 2**20:
            tm = max(8, _round_up(tm // 2, 8))
        return tm

    def __call__(self, x, *cat_list, tm=None):
        assert len(self.n_cat_list) <= len(cat_list), \
            "nb. categorical args provided doesn't match init. params."
        one_hot_cat_list = []
        for n_cat, cat in zip(self.n_cat_list, cat_list):
            assert not (n_cat and cat is None), \
                "cat not provided while n_cat != 0 in init. params."
            if n_cat > 1:
                cat = jnp.asarray(cat)
                if cat.ndim == 2 and cat.shape[1] == n_cat:
                    oh = cat.astype(jnp.float32)
                else:
                    oh = jax.nn.one_hot(cat.reshape(-1), n_cat, dtype=jnp.float32)
                one_hot_cat_list.append(oh)

        x = jnp.asarray(x, jnp.float32)
        n = x.shape[0]
        # TODO(synk): the torch x.size(0) == 0 (empty-batch) branch is not supported.

        if one_hot_cat_list:
            one_hot_all = jnp.concatenate(one_hot_cat_list, axis=-1)    # (n, cat_dim)
        else:
            one_hot_all = jnp.zeros((n, 0), jnp.float32)

        if tm is None:
            tm = self._choose_tm(n)

        return _forward_jit(x, one_hot_all, self.w_x, self.w_c, self.b_rows,
                            n_out=self.n_out, tm=tm)


if __name__ == "__main__":
    key = jax.random.PRNGKey(0)
    kx, kc0, kc1, kparams = jax.random.split(key, 4)

    n_samples, n_in, n_hidden, n_out = 8, 32, 64, 16
    n_cat_list = [3, 2]

    x = jax.random.normal(kx, (n_samples, n_in), jnp.float32)
    cat0 = jax.random.randint(kc0, (n_samples,), 0, n_cat_list[0])
    cat1 = jax.random.randint(kc1, (n_samples,), 0, n_cat_list[1])

    model = FCLayersMonotonicPallas(n_in=n_in, n_out=n_out, n_cat_list=n_cat_list,
                                    n_layers=2, n_hidden=n_hidden, key=kparams)
    out = jax.block_until_ready(model(x, cat0, cat1))
    assert out.shape == (n_samples, n_out), out.shape
    assert bool(jnp.all(jnp.isfinite(out)))

    # Pure-JAX f32 reference (kernel feeds bf16 to the MXU => tolerance-based check).
    one_hots = [jax.nn.one_hot(cat0, n_cat_list[0], dtype=jnp.float32),
                jax.nn.one_hot(cat1, n_cat_list[1], dtype=jnp.float32)]
    h = x
    for (W, b) in model.raw_params:
        feats = jnp.concatenate([h] + one_hots, axis=-1)
        h = jnp.tanh(feats @ jax.nn.softplus(W).T + b)
    ref = h
    max_err = float(jnp.max(jnp.abs(out - ref)))
    assert bool(jnp.allclose(out, ref, atol=5e-2, rtol=5e-2)), max_err

    print("KERNEL_OK")
</pallas_src>

<mosaic_0001>
module attributes {stable_mosaic.version = 11 : i64} {
  func.func @_fused_mlp_kernel(%arg0: i32, %arg1: memref<8x128xbf16, #tpu.memory_space<vmem>>, %arg2: memref<8x128xbf16, #tpu.memory_space<vmem>>, %arg3: memref<128x128xbf16, #tpu.memory_space<vmem>>, %arg4: memref<128x128xbf16, #tpu.memory_space<vmem>>, %arg5: memref<1x128xf32, #tpu.memory_space<vmem>>, %arg6: memref<128x128xbf16, #tpu.memory_space<vmem>>, %arg7: memref<128x128xbf16, #tpu.memory_space<vmem>>, %arg8: memref<1x128xf32, #tpu.memory_space<vmem>>, %arg9: memref<8x128xf32, #tpu.memory_space<vmem>>) attributes {dimension_semantics = [#tpu.dimension_semantics<parallel>], iteration_bounds = array<i64: 1>, scalar_prefetch = 0 : i64, scratch_operands = 0 : i64, tpu.core_type = #tpu.core_type<tc>, window_params = [{transform_indices = @transform_0, window_bounds = array<i64: 8, 128>}, {transform_indices = @transform_1, window_bounds = array<i64: 8, 128>}, {pipeline_mode = #tpu.pipeline_mode<synchronous>, transform_indices = @transform_2, window_bounds = array<i64: 128, 128>}, {pipeline_mode = #tpu.pipeline_mode<synchronous>, transform_indices = @transform_3, window_bounds = array<i64: 128, 128>}, {pipeline_mode = #tpu.pipeline_mode<synchronous>, transform_indices = @transform_4, window_bounds = array<i64: 1, 128>}, {pipeline_mode = #tpu.pipeline_mode<synchronous>, transform_indices = @transform_5, window_bounds = array<i64: 128, 128>}, {pipeline_mode = #tpu.pipeline_mode<synchronous>, transform_indices = @transform_6, window_bounds = array<i64: 128, 128>}, {pipeline_mode = #tpu.pipeline_mode<synchronous>, transform_indices = @transform_7, window_bounds = array<i64: 1, 128>}, {transform_indices = @transform_8, window_bounds = array<i64: 8, 128>}]} {
    %c0 = arith.constant 0 : index
    %c0_0 = arith.constant 0 : index
    %0 = vector.load %arg1[%c0, %c0_0] : memref<8x128xbf16, #tpu.memory_space<vmem>>, vector<8x128xbf16>
    %c0_1 = arith.constant 0 : index
    %c0_2 = arith.constant 0 : index
    %1 = vector.load %arg2[%c0_1, %c0_2] : memref<8x128xbf16, #tpu.memory_space<vmem>>, vector<8x128xbf16>
    %c0_3 = arith.constant 0 : index
    %c0_4 = arith.constant 0 : index
    %2 = vector.load %arg3[%c0_3, %c0_4] : memref<128x128xbf16, #tpu.memory_space<vmem>>, vector<128x128xbf16>
    %c0_5 = arith.constant 0 : index
    %c0_6 = arith.constant 0 : index
    %3 = vector.load %arg4[%c0_5, %c0_6] : memref<128x128xbf16, #tpu.memory_space<vmem>>, vector<128x128xbf16>
    %c0_7 = arith.constant 0 : index
    %c0_8 = arith.constant 0 : index
    %4 = vector.load %arg5[%c0_7, %c0_8] : memref<1x128xf32, #tpu.memory_space<vmem>>, vector<1x128xf32>
    %cst = arith.constant dense<0.000000e+00> : vector<8x128xf32>
    %5 = tpu.matmul %0, %2, %cst {dimension_numbers = #tpu.dot_dimension_numbers<[1], [0], [0], [1], [0, 0, 1, 1], [], []>} : vector<8x128xbf16>, vector<128x128xbf16>, vector<8x128xf32> -> vector<8x128xf32>
    %cst_9 = arith.constant dense<0.000000e+00> : vector<8x128xf32>
    %6 = tpu.matmul %1, %3, %cst_9 {dimension_numbers = #tpu.dot_dimension_numbers<[1], [0], [0], [1], [0, 0, 1, 1], [], []>} : vector<8x128xbf16>, vector<128x128xbf16>, vector<8x128xf32> -> vector<8x128xf32>
    %7 = arith.addf %5, %6 : vector<8x128xf32>
    %8 = vector.broadcast %4 : vector<1x128xf32> to vector<8x128xf32>
    %9 = arith.addf %7, %8 : vector<8x128xf32>
    %10 = math.tanh %9 : vector<8x128xf32>
    %11 = arith.truncf %10 : vector<8x128xf32> to vector<8x128xbf16>
    %c0_10 = arith.constant 0 : index
    %c0_11 = arith.constant 0 : index
    %12 = vector.load %arg6[%c0_10, %c0_11] : memref<128x128xbf16, #tpu.memory_space<vmem>>, vector<128x128xbf16>
    %c0_12 = arith.constant 0 : index
    %c0_13 = arith.constant 0 : index
    %13 = vector.load %arg7[%c0_12, %c0_13] : memref<128x128xbf16, #tpu.memory_space<vmem>>, vector<128x128xbf16>
    %c0_14 = arith.constant 0 : index
    %c0_15 = arith.constant 0 : index
    %14 = vector.load %arg8[%c0_14, %c0_15] : memref<1x128xf32, #tpu.memory_space<vmem>>, vector<1x128xf32>
    %cst_16 = arith.constant dense<0.000000e+00> : vector<8x128xf32>
    %15 = tpu.matmul %11, %12, %cst_16 {dimension_numbers = #tpu.dot_dimension_numbers<[1], [0], [0], [1], [0, 0, 1, 1], [], []>} : vector<8x128xbf16>, vector<128x128xbf16>, vector<8x128xf32> -> vector<8x128xf32>
    %cst_17 = arith.constant dense<0.000000e+00> : vector<8x128xf32>
    %16 = tpu.matmul %1, %13, %cst_17 {dimension_numbers = #tpu.dot_dimension_numbers<[1], [0], [0], [1], [0, 0, 1, 1], [], []>} : vector<8x128xbf16>, vector<128x128xbf16>, vector<8x128xf32> -> vector<8x128xf32>
    %17 = arith.addf %15, %16 : vector<8x128xf32>
    %18 = vector.broadcast %14 : vector<1x128xf32> to vector<8x128xf32>
    %19 = arith.addf %17, %18 : vector<8x128xf32>
    %20 = math.tanh %19 : vector<8x128xf32>
    %c0_18 = arith.constant 0 : index
    %c0_19 = arith.constant 0 : index
    %21 = vector.load %arg9[%c0_18, %c0_19] : memref<8x128xf32, #tpu.memory_space<vmem>>, vector<8x128xf32>
    tpu.vector_store %arg9[%c0_18, %c0_19], %20 {strides = array<i32>} : memref<8x128xf32, #tpu.memory_space<vmem>>, vector<8x128xf32>,
    return
  }
  func.func @transform_0(%arg0: i32) -> (i32, i32) {
    %c0_i32 = arith.constant 0 : i32
    %c0_i32_0 = arith.constant 0 : i32
    return %arg0, %c0_i32 : i32, i32
  }
  func.func @transform_1(%arg0: i32) -> (i32, i32) {
    %c0_i32 = arith.constant 0 : i32
    %c0_i32_0 = arith.constant 0 : i32
    return %arg0, %c0_i32 : i32, i32
  }
  func.func @transform_2(%arg0: i32) -> (i32, i32) {
    %c0_i32 = arith.constant 0 : i32
    %c0_i32_0 = arith.constant 0 : i32
    %c0_i32_1 = arith.constant 0 : i32
    return %c0_i32, %c0_i32_0 : i32, i32
  }
  func.func @transform_3(%arg0: i32) -> (i32, i32) {
    %c0_i32 = arith.constant 0 : i32
    %c0_i32_0 = arith.constant 0 : i32
    %c0_i32_1 = arith.constant 0 : i32
    return %c0_i32, %c0_i32_0 : i32, i32
  }
  func.func @transform_4(%arg0: i32) -> (i32, i32) {
    %c0_i32 = arith.constant 0 : i32
    %c0_i32_0 = arith.constant 0 : i32
    %c0_i32_1 = arith.constant 0 : i32
    return %c0_i32, %c0_i32_0 : i32, i32
  }
  func.func @transform_5(%arg0: i32) -> (i32, i32) {
    %c0_i32 = arith.constant 0 : i32
    %c0_i32_0 = arith.constant 0 : i32
    %c0_i32_1 = arith.constant 0 : i32
    return %c0_i32, %c0_i32_0 : i32, i32
  }
  func.func @transform_6(%arg0: i32) -> (i32, i32) {
    %c0_i32 = arith.constant 0 : i32
    %c0_i32_0 = arith.constant 0 : i32
    %c0_i32_1 = arith.constant 0 : i32
    return %c0_i32, %c0_i32_0 : i32, i32
  }
  func.func @transform_7(%arg0: i32) -> (i32, i32) {
    %c0_i32 = arith.constant 0 : i32
    %c0_i32_0 = arith.constant 0 : i32
    %c0_i32_1 = arith.constant 0 : i32
    return %c0_i32, %c0_i32_0 : i32, i32
  }
  func.func @transform_8(%arg0: i32) -> (i32, i32) {
    %c0_i32 = arith.constant 0 : i32
    %c0_i32_0 = arith.constant 0 : i32
    return %arg0, %c0_i32 : i32, i32
  }
}

</mosaic_0001>

<llo_original>
// kernel: _forward_jit.1
$region0: #{_forward_jit.1}
  #allocation0 [shape = 'u32[]', space=smem, size = 0x4, offset = 0x4, fixed_abs, tag = 'smem constant byte address 0x4 - core index']
  #allocation1 [shape = 'u32[72,128]{1,0:T(1,128)}', space=vmem, size = 0x9000, scoped, tag = 'internal scratch']
  %s0 = inlined_call_operand.vmem [shape: bf16[8,128], index: 0, kind: input, shape index: {}]
  %s1 = inlined_call_operand.vmem [shape: bf16[8,128], index: 1, kind: input, shape index: {}]
  %s2 = inlined_call_operand.hbm [shape: bf16[128,128], index: 2, kind: input, shape index: {}]
  %s3 = inlined_call_operand.hbm [shape: bf16[128,128], index: 3, kind: input, shape index: {}]
  %s4 = inlined_call_operand.vmem [shape: f32[1,128], index: 4, kind: input, shape index: {}]
  %s5 = inlined_call_operand.hbm [shape: bf16[128,128], index: 5, kind: input, shape index: {}]
  %s6 = inlined_call_operand.hbm [shape: bf16[128,128], index: 6, kind: input, shape index: {}]
  %s7 = inlined_call_operand.vmem [shape: f32[1,128], index: 7, kind: input, shape index: {}]
  %s8 = inlined_call_operand.hbm [shape: f32[8,128], index: 8, kind: output, shape index: {}]
  %s9 = sld [smem:[#allocation0]]
  $region58: #{_forward_jit.1} parent=0
    _
  %s11 = ssub.s32 1, %s9
  %s12 = scalar_select 0, %s11, %s9
  $region1: #{_forward_jit.1} parent=0
    #allocation2 [shape = 'u8[32768]{0}', space=vmem, size = 0x8000, scoped, tag = 'input window, operand 2, single buffered']
    #allocation3 [shape = 's32[1]{0}', space=sflag, size = 0x4, scoped, tag = 'scoped memory for _forward_jit.1']
    #allocation4 [shape = 's32[1]{0}', space=sflag, size = 0x4, scoped, tag = 'scoped memory for _forward_jit.1']
    #allocation5 [shape = 'u8[32768]{0}', space=vmem, size = 0x8000, scoped, tag = 'input window, operand 3, single buffered']
    #allocation6 [shape = 's32[1]{0}', space=sflag, size = 0x4, scoped, tag = 'scoped memory for _forward_jit.1']
    #allocation7 [shape = 'u8[32768]{0}', space=vmem, size = 0x8000, scoped, tag = 'input window, operand 5, single buffered']
    #allocation8 [shape = 'u8[32768]{0}', space=vmem, size = 0x8000, scoped, tag = 'input window, operand 6, single buffered']
    #allocation9 [shape = 's32[1]{0}', space=sflag, size = 0x4, scoped, tag = 'scoped memory for _forward_jit.1']
    #allocation10 [shape = 'u8[4096]{0}', space=vmem, size = 0x1000, scoped, tag = 'output window, operand 0, single buffered']
    %13 = vsyncpa [#allocation3], 0
    %14 = vsyncpa [#allocation6], 0
    %15 = vsyncpa [#allocation9], 0
    %16 = vsyncpa [#allocation4], 0
    // Predicated region
    $region2: #{_forward_jit.1} parent=1 // pred_check
      _
    $region3: #{_forward_jit.1} parent=1 // pred_check_branch
      %18 = sbr.rel (0) target = $region5
    $region4: #{_forward_jit.1} parent=1 // pred_region
      _
    $region5: #{_forward_jit.1} parent=1 // pred_fallthru
      _
    // Predicated region
    $region6: #{_forward_jit.1} parent=1 // pred_check
      _
    $region7: #{_forward_jit.1} parent=1 // pred_check_branch
      %20 = sbr.rel (0) target = $region9
    $region8: #{_forward_jit.1} parent=1 // pred_region
      _
    $region9: #{_forward_jit.1} parent=1 // pred_fallthru
      _
    // Predicated region
    $region10: #{_forward_jit.1} parent=1 // pred_check
      _
    $region11: #{_forward_jit.1} parent=1 // pred_check_branch
      %22 = sbr.rel (0) target = $region13
    $region12: #{_forward_jit.1} parent=1 // pred_region
      %24 = vsyncadd [#allocation3], 0
      %s25 = sshll.u32 %s2, 4
      %s26 = int_to_ptr.hbm [resolvable:$true] %s25
      %s27 = sshll.u32 [#allocation2], 4
      %s28 = int_to_ptr.vmem [resolvable:$true] %s27
      %33 = dma.hbm_to_vmem [thread:$0]  %s26, 1024, %s28, [#allocation3], 64, 64, 4
    $region13: #{_forward_jit.1} parent=1 // pred_fallthru
      _
    // Predicated region
    $region14: #{_forward_jit.1} parent=1 // pred_check
      _
    $region15: #{_forward_jit.1} parent=1 // pred_check_branch
      %35 = sbr.rel (0) target = $region17
    $region16: #{_forward_jit.1} parent=1 // pred_region
      %37 = vsyncadd [#allocation6], 0
      %s38 = sshll.u32 %s3, 4
      %s39 = int_to_ptr.hbm [resolvable:$true] %s38
      %s40 = sshll.u32 [#allocation5], 4
      %s41 = int_to_ptr.vmem [resolvable:$true] %s40
      %46 = dma.hbm_to_vmem [thread:$0]  %s39, 1024, %s41, [#allocation6], 64, 64, 4
    $region17: #{_forward_jit.1} parent=1 // pred_fallthru
      _
    // Predicated region
    $region18: #{_forward_jit.1} parent=1 // pred_check
      _
    $region19: #{_forward_jit.1} parent=1 // pred_check_branch
      %48 = sbr.rel (0) target = $region21
    $region20: #{_forward_jit.1} parent=1 // pred_region
      _
    $region21: #{_forward_jit.1} parent=1 // pred_fallthru
      _
    // Predicated region
    $region22: #{_forward_jit.1} parent=1 // pred_check
      _
    $region23: #{_forward_jit.1} parent=1 // pred_check_branch
      %50 = sbr.rel (0) target = $region25
    $region24: #{_forward_jit.1} parent=1 // pred_region
      %52 = vsyncadd [#allocation6], 0
      %s53 = sshll.u32 %s5, 4
      %s54 = int_to_ptr.hbm [resolvable:$true] %s53
      %s55 = sshll.u32 [#allocation7], 4
      %s56 = int_to_ptr.vmem [resolvable:$true] %s55
      %61 = dma.hbm_to_vmem [thread:$0]  %s54, 1024, %s56, [#allocation6], 64, 64, 4
    $region25: #{_forward_jit.1} parent=1 // pred_fallthru
      _
    // Predicated region
    $region26: #{_forward_jit.1} parent=1 // pred_check
      _
    $region27: #{_forward_jit.1} parent=1 // pred_check_branch
      %63 = sbr.rel (0) target = $region29
    $region28: #{_forward_jit.1} parent=1 // pred_region
      %65 = vsyncadd [#allocation9], 0
      %s66 = sshll.u32 %s6, 4
      %s67 = int_to_ptr.hbm [resolvable:$true] %s66
      %s68 = sshll.u32 [#allocation8], 4
      %s69 = int_to_ptr.vmem [resolvable:$true] %s68
      %74 = dma.hbm_to_vmem [thread:$0]  %s67, 1024, %s69, [#allocation9], 64, 64, 4
    $region29: #{_forward_jit.1} parent=1 // pred_fallthru
      _
    // Predicated region
    $region30: #{_forward_jit.1} parent=1 // pred_check
      _
    $region31: #{_forward_jit.1} parent=1 // pred_check_branch
      %76 = sbr.rel (0) target = $region33
    $region32: #{_forward_jit.1} parent=1 // pred_region
      _
    $region33: #{_forward_jit.1} parent=1 // pred_fallthru
      _
    // Predicated region
    $region34: #{_forward_jit.1} parent=1 // pred_check
      _
    $region35: #{_forward_jit.1} parent=1 // pred_check_branch
      %78 = sbr.rel (0) target = $region37
    $region36: #{_forward_jit.1} parent=1 // pred_region
      %80 = dma.done [#allocation3], 1024
    $region37: #{_forward_jit.1} parent=1 // pred_fallthru
      _
    // Predicated region
    $region38: #{_forward_jit.1} parent=1 // pred_check
      _
    $region39: #{_forward_jit.1} parent=1 // pred_check_branch
      %82 = sbr.rel (0) target = $region41
    $region40: #{_forward_jit.1} parent=1 // pred_region
      %84 = dma.done [#allocation6], 1024
    $region41: #{_forward_jit.1} parent=1 // pred_fallthru
      _
    // Predicated region
    $region42: #{_forward_jit.1} parent=1 // pred_check
      _
    $region43: #{_forward_jit.1} parent=1 // pred_check_branch
      %86 = sbr.rel (0) target = $region45
    $region44: #{_forward_jit.1} parent=1 // pred_region
      %88 = dma.done [#allocation6], 1024
    $region45: #{_forward_jit.1} parent=1 // pred_fallthru
      _
    // Predicated region
    $region46: #{_forward_jit.1} parent=1 // pred_check
      _
    $region47: #{_forward_jit.1} parent=1 // pred_check_branch
      %90 = sbr.rel (0) target = $region49
    $region48: #{_forward_jit.1} parent=1 // pred_region
      %92 = dma.done [#allocation9], 1024
    $region49: #{_forward_jit.1} parent=1 // pred_fallthru
      _
    %v93 = vld [vmem:[%s0] sm:$0xf]
    %v94 = vld [vmem:[%s1] sm:$0xf]
    %v95 = vld [vmem:[#allocation2] sm:$0xf]
    %v96 = vld [vmem:[#allocation2 + $0x4] sm:$0xf]
    %v97 = vld [vmem:[#allocation2 + $0x8] sm:$0xf]
    %v98 = vld [vmem:[#allocation2 + $0xc] sm:$0xf]
    %v99 = vld [vmem:[#allocation2 + $0x10] sm:$0xf]
    %v100 = vld [vmem:[#allocation2 + $0x14] sm:$0xf]
    %v101 = vld [vmem:[#allocation2 + $0x18] sm:$0xf]
    %v102 = vld [vmem:[#allocation2 + $0x1c] sm:$0xf]
    %v103 = vld [vmem:[#allocation2 + $0x20] sm:$0xf]
    %v104 = vld [vmem:[#allocation2 + $0x24] sm:$0xf]
    %v105 = vld [vmem:[#allocation2 + $0x28] sm:$0xf]
    %v106 = vld [vmem:[#allocation2 + $0x2c] sm:$0xf]
    %v107 = vld [vmem:[#allocation2 + $0x30] sm:$0xf]
    %v108 = vld [vmem:[#allocation2 + $0x34] sm:$0xf]
    %v109 = vld [vmem:[#allocation2 + $0x38] sm:$0xf]
    %v110 = vld [vmem:[#allocation2 + $0x3c] sm:$0xf]
    %v111 = vld [vmem:[#allocation5] sm:$0xf]
    %v112 = vld [vmem:[#allocation5 + $0x4] sm:$0xf]
    %v113 = vld [vmem:[#allocation5 + $0x8] sm:$0xf]
    %v114 = vld [vmem:[#allocation5 + $0xc] sm:$0xf]
    %v115 = vld [vmem:[#allocation5 + $0x10] sm:$0xf]
    %v116 = vld [vmem:[#allocation5 + $0x14] sm:$0xf]
    %v117 = vld [vmem:[#allocation5 + $0x18] sm:$0xf]
    %v118 = vld [vmem:[#allocation5 + $0x1c] sm:$0xf]
    %v119 = vld [vmem:[#allocation5 + $0x20] sm:$0xf]
    %v120 = vld [vmem:[#allocation5 + $0x24] sm:$0xf]
    %v121 = vld [vmem:[#allocation5 + $0x28] sm:$0xf]
    %v122 = vld [vmem:[#allocation5 + $0x2c] sm:$0xf]
    %v123 = vld [vmem:[#allocation5 + $0x30] sm:$0xf]
    %v124 = vld [vmem:[#allocation5 + $0x34] sm:$0xf]
    %v125 = vld [vmem:[#allocation5 + $0x38] sm:$0xf]
    %v126 = vld [vmem:[#allocation5 + $0x3c] sm:$0xf]
    %v127 = vld [vmem:[%s4] sm:$0x1]
    %v144 = vunpack.c.l.b16 %v111
    %v145 = vunpack.c.l.b16 %v112
    %v146 = vunpack.c.l.b16 %v113
    %v147 = vunpack.c.l.b16 %v114
    %v148 = vunpack.c.l.b16 %v115
    %v149 = vunpack.c.l.b16 %v116
    %v150 = vunpack.c.l.b16 %v117
    %v151 = vunpack.c.l.b16 %v118
    %v152 = vunpack.c.l.b16 %v119
    %v153 = vunpack.c.l.b16 %v120
    %v154 = vunpack.c.l.b16 %v121
    %v155 = vunpack.c.l.b16 %v122
    %v156 = vunpack.c.l.b16 %v123
    %v157 = vunpack.c.l.b16 %v124
    %v158 = vunpack.c.l.b16 %v125
    %v159 = vunpack.c.l.b16 %v126
    %v160 = vpack.c.b16 %v145, %v144
    %v161 = vpack.c.b16 %v147, %v146
    %v162 = vpack.c.b16 %v149, %v148
    %v163 = vpack.c.b16 %v151, %v150
    %v164 = vpack.c.b16 %v153, %v152
    %v165 = vpack.c.b16 %v155, %v154
    %v166 = vpack.c.b16 %v157, %v156
    %v167 = vpack.c.b16 %v159, %v158
    %176 = vmatpush.bf16.msra.mxu0 %v167
    %177 = vmatpush.bf16.msra.mxu0 %v166
    %178 = vmatpush.bf16.msra.mxu0 %v165
    %179 = vmatpush.bf16.msra.mxu0 %v164
    %180 = vmatpush.bf16.msra.mxu0 %v163
    %181 = vmatpush.bf16.msra.mxu0 %v162
    %182 = vmatpush.bf16.msra.mxu0 %v161
    %183 = vmatpush.bf16.msra.mxu0 %v160
    %184 = vmatmul.bf16.gmra.mxu0 %v94
    %v185 = vpop.f32.mrf.mxu0
    %v186 = vadd.f32 0.0, %v185
    %v187 = vpop.f32.mrf.mxu0
    %188 = vdwg.mxu0
    %v205 = vunpack.c.l.b16 %v95
    %v206 = vunpack.c.l.b16 %v96
    %v207 = vunpack.c.l.b16 %v97
    %v208 = vunpack.c.l.b16 %v98
    %v209 = vunpack.c.l.b16 %v99
    %v210 = vunpack.c.l.b16 %v100
    %v211 = vunpack.c.l.b16 %v101
    %v212 = vunpack.c.l.b16 %v102
    %v213 = vunpack.c.l.b16 %v103
    %v214 = vunpack.c.l.b16 %v104
    %v215 = vunpack.c.l.b16 %v105
    %v216 = vunpack.c.l.b16 %v106
    %v217 = vunpack.c.l.b16 %v107
    %v218 = vunpack.c.l.b16 %v108
    %v219 = vunpack.c.l.b16 %v109
    %v220 = vunpack.c.l.b16 %v110
    %v221 = vpack.c.b16 %v206, %v205
    %v222 = vpack.c.b16 %v208, %v207
    %v223 = vpack.c.b16 %v210, %v209
    %v224 = vpack.c.b16 %v212, %v211
    %v225 = vpack.c.b16 %v214, %v213
    %v226 = vpack.c.b16 %v216, %v215
    %v227 = vpack.c.b16 %v218, %v217
    %v228 = vpack.c.b16 %v220, %v219
    %237 = vmatpush.bf16.msra.mxu0 %v228
    %238 = vmatpush.bf16.msra.mxu0 %v227
    %239 = vmatpush.bf16.msra.mxu0 %v226
    %240 = vmatpush.bf16.msra.mxu0 %v225
    %241 = vmatpush.bf16.msra.mxu0 %v224
    %242 = vmatpush.bf16.msra.mxu0 %v223
    %243 = vmatpush.bf16.msra.mxu0 %v222
    %244 = vmatpush.bf16.msra.mxu0 %v221
    %245 = vmatmul.bf16.gmra.mxu0 %v93
    %v246 = vpop.f32.mrf.mxu0
    %v247 = vadd.f32 %v186, %v246
    %v248 = vpop.f32.mrf.mxu0
    %249 = vdwg.mxu0
    %v251 = vperm.slane %v127, 0
    %v253 = vadd.f32 %v247, %v251
    %v254 = vtanh.pop %v253
    %v255 = vpack.c.bf16 %v254, %v254
    %v256 = vld [vmem:[#allocation7] sm:$0xf]
    %v257 = vld [vmem:[#allocation7 + $0x4] sm:$0xf]
    %v258 = vld [vmem:[#allocation7 + $0x8] sm:$0xf]
    %v259 = vld [vmem:[#allocation7 + $0xc] sm:$0xf]
    %v260 = vld [vmem:[#allocation7 + $0x10] sm:$0xf]
    %v261 = vld [vmem:[#allocation7 + $0x14] sm:$0xf]
    %v262 = vld [vmem:[#allocation7 + $0x18] sm:$0xf]
    %v263 = vld [vmem:[#allocation7 + $0x1c] sm:$0xf]
    %v264 = vld [vmem:[#allocation7 + $0x20] sm:$0xf]
    %v265 = vld [vmem:[#allocation7 + $0x24] sm:$0xf]
    %v266 = vld [vmem:[#allocation7 + $0x28] sm:$0xf]
    %v267 = vld [vmem:[#allocation7 + $0x2c] sm:$0xf]
    %v268 = vld [vmem:[#allocation7 + $0x30] sm:$0xf]
    %v269 = vld [vmem:[#allocation7 + $0x34] sm:$0xf]
    %v270 = vld [vmem:[#allocation7 + $0x38] sm:$0xf]
    %v271 = vld [vmem:[#allocation7 + $0x3c] sm:$0xf]
    %v272 = vld [vmem:[#allocation8] sm:$0xf]
    %v273 = vld [vmem:[#allocation8 + $0x4] sm:$0xf]
    %v274 = vld [vmem:[#allocation8 + $0x8] sm:$0xf]
    %v275 = vld [vmem:[#allocation8 + $0xc] sm:$0xf]
    %v276 = vld [vmem:[#allocation8 + $0x10] sm:$0xf]
    %v277 = vld [vmem:[#allocation8 + $0x14] sm:$0xf]
    %v278 = vld [vmem:[#allocation8 + $0x18] sm:$0xf]
    %v279 = vld [vmem:[#allocation8 + $0x1c] sm:$0xf]
    %v280 = vld [vmem:[#allocation8 + $0x20] sm:$0xf]
    %v281 = vld [vmem:[#allocation8 + $0x24] sm:$0xf]
    %v282 = vld [vmem:[#allocation8 + $0x28] sm:$0xf]
    %v283 = vld [vmem:[#allocation8 + $0x2c] sm:$0xf]
    %v284 = vld [vmem:[#allocation8 + $0x30] sm:$0xf]
    %v285 = vld [vmem:[#allocation8 + $0x34] sm:$0xf]
    %v286 = vld [vmem:[#allocation8 + $0x38] sm:$0xf]
    %v287 = vld [vmem:[#allocation8 + $0x3c] sm:$0xf]
    %v288 = vld [vmem:[%s7] sm:$0x1]
    %v305 = vunpack.c.l.b16 %v272
    %v306 = vunpack.c.l.b16 %v273
    %v307 = vunpack.c.l.b16 %v274
    %v308 = vunpack.c.l.b16 %v275
    %v309 = vunpack.c.l.b16 %v276
    %v310 = vunpack.c.l.b16 %v277
    %v311 = vunpack.c.l.b16 %v278
    %v312 = vunpack.c.l.b16 %v279
    %v313 = vunpack.c.l.b16 %v280
    %v314 = vunpack.c.l.b16 %v281
    %v315 = vunpack.c.l.b16 %v282
    %v316 = vunpack.c.l.b16 %v283
    %v317 = vunpack.c.l.b16 %v284
    %v318 = vunpack.c.l.b16 %v285
    %v319 = vunpack.c.l.b16 %v286
    %v320 = vunpack.c.l.b16 %v287
    %v321 = vpack.c.b16 %v306, %v305
    %v322 = vpack.c.b16 %v308, %v307
    %v323 = vpack.c.b16 %v310, %v309
    %v324 = vpack.c.b16 %v312, %v311
    %v325 = vpack.c.b16 %v314, %v313
    %v326 = vpack.c.b16 %v316, %v315
    %v327 = vpack.c.b16 %v318, %v317
    %v328 = vpack.c.b16 %v320, %v319
    %337 = vmatpush.bf16.msra.mxu0 %v328
    %338 = vmatpush.bf16.msra.mxu0 %v327
    %339 = vmatpush.bf16.msra.mxu0 %v326
    %340 = vmatpush.bf16.msra.mxu0 %v325
    %341 = vmatpush.bf16.msra.mxu0 %v324
    %342 = vmatpush.bf16.msra.mxu0 %v323
    %343 = vmatpush.bf16.msra.mxu0 %v322
    %344 = vmatpush.bf16.msra.mxu0 %v321
    %345 = vmatmul.bf16.gmra.mxu0 %v94
    %v346 = vpop.f32.mrf.mxu0
    %v347 = vadd.f32 0.0, %v346
    %v348 = vpop.f32.mrf.mxu0
    %349 = vdwg.mxu0
    %v366 = vunpack.c.l.b16 %v256
    %v367 = vunpack.c.l.b16 %v257
    %v368 = vunpack.c.l.b16 %v258
    %v369 = vunpack.c.l.b16 %v259
    %v370 = vunpack.c.l.b16 %v260
    %v371 = vunpack.c.l.b16 %v261
    %v372 = vunpack.c.l.b16 %v262
    %v373 = vunpack.c.l.b16 %v263
    %v374 = vunpack.c.l.b16 %v264
    %v375 = vunpack.c.l.b16 %v265
    %v376 = vunpack.c.l.b16 %v266
    %v377 = vunpack.c.l.b16 %v267
    %v378 = vunpack.c.l.b16 %v268
    %v379 = vunpack.c.l.b16 %v269
    %v380 = vunpack.c.l.b16 %v270
    %v381 = vunpack.c.l.b16 %v271
    %v382 = vpack.c.b16 %v367, %v366
    %v383 = vpack.c.b16 %v369, %v368
    %v384 = vpack.c.b16 %v371, %v370
    %v385 = vpack.c.b16 %v373, %v372
    %v386 = vpack.c.b16 %v375, %v374
    %v387 = vpack.c.b16 %v377, %v376
    %v388 = vpack.c.b16 %v379, %v378
    %v389 = vpack.c.b16 %v381, %v380
    %398 = vmatpush.bf16.msra.mxu0 %v389
    %399 = vmatpush.bf16.msra.mxu0 %v388
    %400 = vmatpush.bf16.msra.mxu0 %v387
    %401 = vmatpush.bf16.msra.mxu0 %v386
    %402 = vmatpush.bf16.msra.mxu0 %v385
    %403 = vmatpush.bf16.msra.mxu0 %v384
    %404 = vmatpush.bf16.msra.mxu0 %v383
    %405 = vmatpush.bf16.msra.mxu0 %v382
    %406 = vmatmul.bf16.gmra.mxu0 %v255
    %v407 = vpop.f32.mrf.mxu0
    %v408 = vadd.f32 %v347, %v407
    %v409 = vpop.f32.mrf.mxu0
    %410 = vdwg.mxu0
    %v412 = vperm.slane %v288, 0
    %v414 = vadd.f32 %v408, %v412
    %v415 = vtanh.pop %v414
    %416 = vst [vmem:[#allocation10] sm:$0xff] %v415
    // Predicated region
    $region50: #{_forward_jit.1} parent=1 // pred_check
      _
    $region51: #{_forward_jit.1} parent=1 // pred_check_branch
      %418 = sbr.rel (0) target = $region53
    $region52: #{_forward_jit.1} parent=1 // pred_region
      %420 = vsyncadd [#allocation4], 0
      %s422 = sshll.u32 [#allocation10], 4
      %s423 = int_to_ptr.vmem [resolvable:$true] %s422
      %s424 = sshll.u32 %s8, 4
      %s425 = int_to_ptr.hbm [resolvable:$true] %s424
      %427 = dma.vmem_to_hbm [thread:$0]  %s423, 128, %s425, [#allocation4]
    $region53: #{_forward_jit.1} parent=1 // pred_fallthru
      _
    // Predicated region
    $region54: #{_forward_jit.1} parent=1 // pred_check
      _
    $region55: #{_forward_jit.1} parent=1 // pred_check_branch
      %429 = sbr.rel (0) target = $region57
    $region56: #{_forward_jit.1} parent=1 // pred_region
      %431 = dma.done [#allocation4], 128
    $region57: #{_forward_jit.1} parent=1 // pred_fallthru
      _
    %432 = vsyncpa [#allocation3], 1
    %433 = vsyncpa [#allocation6], 1
    %434 = vsyncpa [#allocation9], 1
    %435 = vsyncpa [#allocation4], 1

</llo_original>
